<compile_context>
chip_gen: v7x
topology: tpu7x:2x2x1
jax: 0.10.0
libtpu: 0.0.40
codegen_flags: <defaults>
</compile_context>

<pallas_src>
import functools
import math

import jax
import jax.numpy as jnp
from jax.experimental import pallas as pl
from jax.experimental.pallas import tpu as pltpu


# ----------------------------- tiling helpers --------------------------------

def _pick_tile(n, target):
    """Largest divisor of n that is <= target and 8-aligned (else the full axis)."""
    if n <= target:
        return n
    best = None
    for t in range(8, min(n, target) + 1, 8):
        if n % t == 0:
            best = t
    return best if best is not None else n


def _heads_per_group(total_heads, head_dim, target_cols=512):
    """Largest divisor of total_heads whose column width (g*head_dim) <= target_cols."""
    cap = max(1, target_cols // head_dim)
    best = 1
    for g in range(1, total_heads + 1):
        if total_heads % g == 0 and g <= cap:
            best = g
    return best


# ----------------------------- kernels ----------------------------------------

def _qkv_proj_kernel(x_ref, w_ref, o_ref, *, heads_in_group, head_dim):
    # x_ref: (1, tm, D)   w_ref: (D, hg*Dh)  (in,out layout, q columns pre-scaled)
    # o_ref: (1, hg, tm, Dh)   head-major packed [q heads | k heads | v heads]
    x = x_ref[0]
    y = jax.lax.dot_general(
        x, w_ref[...],
        dimension_numbers=(((1,), (0,)), ((), ())),   # canonical (M,K)x(K,N) MXU feed
        preferred_element_type=jnp.float32)           # f32 accumulation
    y = y.astype(o_ref.dtype)                         # one cast of the whole tile
    for j in range(heads_in_group):                   # static: per-head lane slice -> store
        o_ref[0, j] = y[:, j * head_dim:(j + 1) * head_dim]


def _flash_attn_kernel(q_ref, k_ref, v_ref, wf_ref, b_ref, o_ref,
                       m_ref, l_ref, acc_ref, *,
                       q_blk, kv_blk, num_kv_blocks, num_heads):
    # q_ref/k_ref/v_ref: (1, H, tq/tk, Dh)    wf_ref: (H, Dh, D)   b_ref: (1, D)
    # o_ref: (1, tq, D)  scratch: m/l (H, tq, 1) f32, acc (H, tq, Dh) f32
    qi = pl.program_id(1)
    ki = pl.program_id(2)

    @pl.when(ki == 0)
    def _init():
        m_ref[...] = jnp.full(m_ref.shape, -jnp.inf, m_ref.dtype)
        l_ref[...] = jnp.zeros(l_ref.shape, l_ref.dtype)
        acc_ref[...] = jnp.zeros(acc_ref.shape, acc_ref.dtype)

    # Causal tile skip: only process kv tiles that overlap the causal region.
    @pl.when(ki * kv_blk < (qi + 1) * q_blk)
    def _compute():
        q = q_ref[0]                                  # (H, tq, Dh), pre-scaled by 1/sqrt(Dh)
        k = k_ref[0]
        v = v_ref[0]
        s = jnp.einsum("hqd,hkd->hqk", q, k,
                       preferred_element_type=jnp.float32)      # (H, tq, tk) f32
        # in-tile causal mask (only has an effect on tiles crossing the diagonal)
        row = jax.lax.broadcasted_iota(jnp.int32, s.shape, 1) + qi * q_blk
        col = jax.lax.broadcasted_iota(jnp.int32, s.shape, 2) + ki * kv_blk
        s = jnp.where(col > row, jnp.float32(-1e30), s)

        m_prev = m_ref[...]
        m_new = jnp.maximum(m_prev, jnp.max(s, axis=-1, keepdims=True))
        alpha = jnp.exp(m_prev - m_new)               # f32 softmax math (v5e-safe)
        p = jnp.exp(s - m_new)
        l_ref[...] = alpha * l_ref[...] + jnp.sum(p, axis=-1, keepdims=True)
        acc_ref[...] = alpha * acc_ref[...] + jnp.einsum(
            "hqk,hkd->hqd", p.astype(v.dtype), v,
            preferred_element_type=jnp.float32)
        m_ref[...] = m_new

    @pl.when(ki == num_kv_blocks - 1)
    def _finalize():
        inv_l = pl.reciprocal(l_ref[...], approx=True)           # EUP slot
        attn = (acc_ref[...] * inv_l).astype(wf_ref.dtype)       # (H, tq, Dh)
        d_out = wf_ref.shape[-1]
        out = jnp.zeros((q_blk, d_out), jnp.float32)
        # Head merge folded into the fused (proj o out_proj) projection:
        # sequential f32 accumulation of per-head (tq,Dh)x(Dh,D) matmuls (no concat).
        for h in range(num_heads):
            out = out + jnp.dot(attn[h], wf_ref[h],
                                preferred_element_type=jnp.float32)
        out = out + b_ref[...].astype(jnp.float32)
        o_ref[0] = out.astype(o_ref.dtype)                       # lane-dense (tq, D) store


# ----------------------------- wrapper ----------------------------------------

def mha_forward(x, params, num_heads, *, compute_dtype=None,
                row_block=256, q_block=256, kv_block=256, qkv_col_block=512,
                vmem_limit_bytes=None, out_dtype=None):
    """Causal MHA (no qkv/out biases, dropout=0) + out_proj + Linear(+bias).

    Default 256 tiles target v6e/v7x MXU fill; use 128 blocks on v5e.
    """
    B, T, D = x.shape
    assert D % num_heads == 0
    Dh = D // num_heads
    out_dtype = out_dtype or x.dtype

    # ---- offline weight prep (f32) -------------------------------------------
    w_in = params["in_proj_weight"].astype(jnp.float32)       # (3D, D) = [Wq; Wk; Wv], (out,in)
    w_q, w_k, w_v = jnp.split(w_in, 3, axis=0)
    scale = 1.0 / math.sqrt(Dh)
    # (in,out) layout; 1/sqrt(Dh) folded into the Wq columns (no per-score scaling).
    w_qkv = jnp.concatenate([w_q * scale, w_k, w_v], axis=0).T        # (D, 3D)
    # out_proj (no bias) then proj:  a @ Wo^T @ Wp^T + b == a @ (Wp Wo)^T + b
    w_fused = (params["proj_weight"].astype(jnp.float32)
               @ params["out_proj_weight"].astype(jnp.float32)).T     # (D, D), (in,out)
    w_fused = w_fused.reshape(num_heads, Dh, D)               # per-head (Dh, D) blocks
    bias = params["proj_bias"].reshape(1, D).astype(jnp.float32)

    cdt = compute_dtype or x.dtype
    x_c = x.astype(cdt)
    w_qkv = w_qkv.astype(cdt)
    w_fused = w_fused.astype(cdt)

    # ---- tiling ---------------------------------------------------------------
    tm = _pick_tile(T, row_block)
    tq = _pick_tile(T, q_block)
    tk = _pick_tile(T, kv_block)
    hg = _heads_per_group(3 * num_heads, Dh, qkv_col_block)   # heads per weight column tile
    n_m, n_g = T // tm, (3 * num_heads) // hg
    n_q, n_kv = T // tq, T // tk

    def _cparams(sem):
        if vmem_limit_bytes is None:
            return pltpu.CompilerParams(dimension_semantics=sem)
        return pltpu.CompilerParams(dimension_semantics=sem,
                                    vmem_limit_bytes=vmem_limit_bytes)

    def _run(weight_mode):
        def wspec(shape, imap):
            if weight_mode is None:
                return pl.BlockSpec(shape, imap)
            return pl.BlockSpec(shape, imap, pipeline_mode=weight_mode)

        # ---- pass 1: packed QKV projection, head-major output -----------------
        # grid: (B, head-groups, row tiles) - row tiles innermost so the weight
        # column tile stays resident while x rows stream.
        qkv = pl.pallas_call(
            functools.partial(_qkv_proj_kernel, heads_in_group=hg, head_dim=Dh),
            out_shape=jax.ShapeDtypeStruct((B, 3 * num_heads, T, Dh), cdt),
            grid_spec=pltpu.PrefetchScalarGridSpec(
                num_scalar_prefetch=0,
                grid=(B, n_g, n_m),
                in_specs=[
                    pl.BlockSpec((1, tm, D), lambda b, g, i: (b, i, 0)),
                    wspec((D, hg * Dh), lambda b, g, i: (0, g)),
                ],
                out_specs=pl.BlockSpec((1, hg, tm, Dh),
                                       lambda b, g, i: (b, g, i, 0)),
            ),
            compiler_params=_cparams(("parallel", "parallel", "parallel")),
        )(x_c, w_qkv)

        # ---- pass 2: flash attention + fused output projection ----------------
        # kv index clamped to the last causally-needed tile so skipped tiles are
        # never DMA'd (Pallas skips re-fetch when the block index is unchanged).
        def _kv_idx(qi, ki):
            return jnp.minimum(ki, ((qi + 1) * tq - 1) // tk)

        out = pl.pallas_call(
            functools.partial(_flash_attn_kernel, q_blk=tq, kv_blk=tk,
                              num_kv_blocks=n_kv, num_heads=num_heads),
            out_shape=jax.ShapeDtypeStruct((B, T, D), out_dtype),
            grid_spec=pltpu.PrefetchScalarGridSpec(
                num_scalar_prefetch=0,
                grid=(B, n_q, n_kv),
                in_specs=[
                    pl.BlockSpec((1, num_heads, tq, Dh),
                                 lambda b, qi, ki: (b, 0, qi, 0)),            # q heads
                    pl.BlockSpec((1, num_heads, tk, Dh),
                                 lambda b, qi, ki: (b, 1, _kv_idx(qi, ki), 0)),  # k heads
                    pl.BlockSpec((1, num_heads, tk, Dh),
                                 lambda b, qi, ki: (b, 2, _kv_idx(qi, ki), 0)),  # v heads
                    wspec((num_heads, Dh, D), lambda b, qi, ki: (0, 0, 0)),   # fused proj
                    wspec((1, D), lambda b, qi, ki: (0, 0)),                  # proj bias
                ],
                out_specs=pl.BlockSpec((1, tq, D), lambda b, qi, ki: (b, qi, 0)),
                scratch_shapes=[
                    pltpu.VMEM((num_heads, tq, 1), jnp.float32),   # running max m
                    pltpu.VMEM((num_heads, tq, 1), jnp.float32),   # running denom l
                    pltpu.VMEM((num_heads, tq, Dh), jnp.float32),  # unnormalised acc
                ],
            ),
            compiler_params=_cparams(("parallel", "parallel", "arbitrary")),
        )(qkv, qkv, qkv, w_fused, bias)
        return out

    try:
        # Resident weights have constant index_maps -> single buffer saves VMEM.
        return _run(pl.Buffered(1))
    except Exception:   # pragma: no cover - jax without BlockSpec pipeline_mode support
        return _run(None)


# ----------------------------- pure-JAX reference ------------------------------

def ref_forward(x, params, num_heads):
    B, T, D = x.shape
    Dh = D // num_heads
    wq, wk, wv = jnp.split(params["in_proj_weight"], 3, axis=0)
    q = (x @ wq.T).reshape(B, T, num_heads, Dh).transpose(0, 2, 1, 3)
    k = (x @ wk.T).reshape(B, T, num_heads, Dh).transpose(0, 2, 1, 3)
    v = (x @ wv.T).reshape(B, T, num_heads, Dh).transpose(0, 2, 1, 3)
    s = jnp.einsum("bhtd,bhsd->bhts", q, k) / math.sqrt(Dh)
    mask = jnp.triu(jnp.ones((T, T), dtype=bool), 1)
    s = jnp.where(mask, -jnp.inf, s)
    p = jax.nn.softmax(s, axis=-1)
    o = jnp.einsum("bhts,bhsd->bhtd", p, v).transpose(0, 2, 1, 3).reshape(B, T, D)
    o = o @ params["out_proj_weight"].T
    return o @ params["proj_weight"].T + params["proj_bias"]


# ----------------------------- test --------------------------------------------

if __name__ == "__main__":
    # small shapes consistent with the module: d_in == d_out (x is fed as q, k, v)
    B, T, D, H = 2, 16, 32, 4
    context_length = 32   # >= T, so the module applies the plain causal mask[:T, :T]

    key = jax.random.PRNGKey(0)
    k1, k2, k3, k4, k5 = jax.random.split(key, 5)
    x = jax.random.normal(k1, (B, T, D), dtype=jnp.float32)

    # deterministic synthetic parameters (shapes from nn.MultiheadAttention / nn.Linear)
    params = {
        "in_proj_weight": 0.1 * jax.random.normal(k2, (3 * D, D), jnp.float32),
        "out_proj_weight": 0.1 * jax.random.normal(k3, (D, D), jnp.float32),
        "proj_weight": 0.1 * jax.random.normal(k4, (D, D), jnp.float32),
        "proj_bias": 0.1 * jax.random.normal(k5, (D,), jnp.float32),
    }
    # qkv_bias=False -> no in_proj bias, no out_proj bias, no bias_k/bias_v

    ref = ref_forward(x, params, H)

    # 1) f32, single-tile path (whole sequence per q/kv tile)
    out = mha_forward(x, params, H)
    jax.block_until_ready(out)
    assert out.shape == (B, T, D) and out.dtype == x.dtype
    assert jnp.allclose(out, ref, atol=5e-3, rtol=5e-3), "f32 single-tile mismatch"

    # 2) f32, multi-tile flash path (online softmax across kv tiles + causal tile skip)
    out_tiled = mha_forward(x, params, H, row_block=8, q_block=8, kv_block=8)
    jax.block_until_ready(out_tiled)
    assert jnp.allclose(out_tiled, ref, atol=5e-3, rtol=5e-3), "f32 tiled mismatch"

    # 3) bf16 MXU operands (f32 accumulation & f32 softmax), multi-tile; f32 output dtype
    out_bf16 = mha_forward(x, params, H, compute_dtype=jnp.bfloat16,
                           row_block=8, q_block=8, kv_block=8)
    jax.block_until_ready(out_bf16)
    assert out_bf16.dtype == x.dtype   # output dtype parity with the PyTorch module
    assert jnp.allclose(out_bf16, ref, atol=3e-2, rtol=3e-2), "bf16 tiled mismatch"

    print("KERNEL_OK")
</pallas_src>

<mosaic_0001>
module attributes {stable_mosaic.version = 11 : i64} {
  func.func @_qkv_proj_kernel(%arg0: i32, %arg1: i32, %arg2: i32, %arg3: memref<1x16x32xf32, #tpu.memory_space<vmem>>, %arg4: memref<32x96xf32, #tpu.memory_space<vmem>>, %arg5: memref<1x12x16x8xf32, #tpu.memory_space<vmem>>) attributes {dimension_semantics = [#tpu.dimension_semantics<parallel>, #tpu.dimension_semantics<parallel>, #tpu.dimension_semantics<parallel>], iteration_bounds = array<i64: 2, 1, 1>, scalar_prefetch = 0 : i64, scratch_operands = 0 : i64, tpu.core_type = #tpu.core_type<tc>, window_params = [{transform_indices = @transform_0, window_bounds = array<i64: 1, 16, 32>}, {pipeline_mode = #tpu.pipeline_mode<synchronous>, transform_indices = @transform_1, window_bounds = array<i64: 32, 96>}, {transform_indices = @transform_2, window_bounds = array<i64: 1, 12, 16, 8>}]} {
    %c0 = arith.constant 0 : index
    %c0_0 = arith.constant 0 : index
    %c0_1 = arith.constant 0 : index
    %0 = vector.load %arg3[%c0, %c0_0, %c0_1] : memref<1x16x32xf32, #tpu.memory_space<vmem>>, vector<1x16x32xf32>
    %1 = vector.shape_cast %0 : vector<1x16x32xf32> to vector<16x32xf32>
    %c0_2 = arith.constant 0 : index
    %c0_3 = arith.constant 0 : index
    %2 = vector.load %arg4[%c0_2, %c0_3] : memref<32x96xf32, #tpu.memory_space<vmem>>, vector<32x96xf32>
    %cst = arith.constant dense<0.000000e+00> : vector<16x96xf32>
    %3 = tpu.matmul %1, %2, %cst {dimension_numbers = #tpu.dot_dimension_numbers<[1], [0], [0], [1], [0, 0, 1, 1], [], []>} : vector<16x32xf32>, vector<32x96xf32>, vector<16x96xf32> -> vector<16x96xf32>
    %4 = vector.extract_strided_slice %3 {offsets = [0, 0], sizes = [16, 8], strides = [1, 1]} : vector<16x96xf32> to vector<16x8xf32>
    %c0_4 = arith.constant 0 : index
    %c0_5 = arith.constant 0 : index
    %c0_6 = arith.constant 0 : index
    %c0_7 = arith.constant 0 : index
    %5 = vector.load %arg5[%c0_4, %c0_5, %c0_6, %c0_7] : memref<1x12x16x8xf32, #tpu.memory_space<vmem>>, vector<1x1x16x8xf32>
    %6 = vector.shape_cast %5 : vector<1x1x16x8xf32> to vector<16x8xf32>
    %7 = vector.shape_cast %4 : vector<16x8xf32> to vector<1x1x16x8xf32>
    tpu.vector_store %arg5[%c0_4, %c0_5, %c0_6, %c0_7], %7 {strides = array<i32>} : memref<1x12x16x8xf32, #tpu.memory_space<vmem>>, vector<1x1x16x8xf32>,
    %8 = vector.extract_strided_slice %3 {offsets = [0, 8], sizes = [16, 8], strides = [1, 1]} : vector<16x96xf32> to vector<16x8xf32>
    %c0_8 = arith.constant 0 : index
    %c1 = arith.constant 1 : index
    %c0_9 = arith.constant 0 : index
    %c0_10 = arith.constant 0 : index
    %9 = vector.load %arg5[%c0_8, %c1, %c0_9, %c0_10] : memref<1x12x16x8xf32, #tpu.memory_space<vmem>>, vector<1x1x16x8xf32>
    %10 = vector.shape_cast %9 : vector<1x1x16x8xf32> to vector<16x8xf32>
    %11 = vector.shape_cast %8 : vector<16x8xf32> to vector<1x1x16x8xf32>
    tpu.vector_store %arg5[%c0_8, %c1, %c0_9, %c0_10], %11 {strides = array<i32>} : memref<1x12x16x8xf32, #tpu.memory_space<vmem>>, vector<1x1x16x8xf32>,
    %12 = vector.extract_strided_slice %3 {offsets = [0, 16], sizes = [16, 8], strides = [1, 1]} : vector<16x96xf32> to vector<16x8xf32>
    %c0_11 = arith.constant 0 : index
    %c2 = arith.constant 2 : index
    %c0_12 = arith.constant 0 : index
    %c0_13 = arith.constant 0 : index
    %13 = vector.load %arg5[%c0_11, %c2, %c0_12, %c0_13] : memref<1x12x16x8xf32, #tpu.memory_space<vmem>>, vector<1x1x16x8xf32>
    %14 = vector.shape_cast %13 : vector<1x1x16x8xf32> to vector<16x8xf32>
    %15 = vector.shape_cast %12 : vector<16x8xf32> to vector<1x1x16x8xf32>
    tpu.vector_store %arg5[%c0_11, %c2, %c0_12, %c0_13], %15 {strides = array<i32>} : memref<1x12x16x8xf32, #tpu.memory_space<vmem>>, vector<1x1x16x8xf32>,
    %16 = vector.extract_strided_slice %3 {offsets = [0, 24], sizes = [16, 8], strides = [1, 1]} : vector<16x96xf32> to vector<16x8xf32>
    %c0_14 = arith.constant 0 : index
    %c3 = arith.constant 3 : index
    %c0_15 = arith.constant 0 : index
    %c0_16 = arith.constant 0 : index
    %17 = vector.load %arg5[%c0_14, %c3, %c0_15, %c0_16] : memref<1x12x16x8xf32, #tpu.memory_space<vmem>>, vector<1x1x16x8xf32>
    %18 = vector.shape_cast %17 : vector<1x1x16x8xf32> to vector<16x8xf32>
    %19 = vector.shape_cast %16 : vector<16x8xf32> to vector<1x1x16x8xf32>
    tpu.vector_store %arg5[%c0_14, %c3, %c0_15, %c0_16], %19 {strides = array<i32>} : memref<1x12x16x8xf32, #tpu.memory_space<vmem>>, vector<1x1x16x8xf32>,
    %20 = vector.extract_strided_slice %3 {offsets = [0, 32], sizes = [16, 8], strides = [1, 1]} : vector<16x96xf32> to vector<16x8xf32>
    %c0_17 = arith.constant 0 : index
    %c4 = arith.constant 4 : index
    %c0_18 = arith.constant 0 : index
    %c0_19 = arith.constant 0 : index
    %21 = vector.load %arg5[%c0_17, %c4, %c0_18, %c0_19] : memref<1x12x16x8xf32, #tpu.memory_space<vmem>>, vector<1x1x16x8xf32>
    %22 = vector.shape_cast %21 : vector<1x1x16x8xf32> to vector<16x8xf32>
    %23 = vector.shape_cast %20 : vector<16x8xf32> to vector<1x1x16x8xf32>
    tpu.vector_store %arg5[%c0_17, %c4, %c0_18, %c0_19], %23 {strides = array<i32>} : memref<1x12x16x8xf32, #tpu.memory_space<vmem>>, vector<1x1x16x8xf32>,
    %24 = vector.extract_strided_slice %3 {offsets = [0, 40], sizes = [16, 8], strides = [1, 1]} : vector<16x96xf32> to vector<16x8xf32>
    %c0_20 = arith.constant 0 : index
    %c5 = arith.constant 5 : index
    %c0_21 = arith.constant 0 : index
    %c0_22 = arith.constant 0 : index
    %25 = vector.load %arg5[%c0_20, %c5, %c0_21, %c0_22] : memref<1x12x16x8xf32, #tpu.memory_space<vmem>>, vector<1x1x16x8xf32>
    %26 = vector.shape_cast %25 : vector<1x1x16x8xf32> to vector<16x8xf32>
    %27 = vector.shape_cast %24 : vector<16x8xf32> to vector<1x1x16x8xf32>
    tpu.vector_store %arg5[%c0_20, %c5, %c0_21, %c0_22], %27 {strides = array<i32>} : memref<1x12x16x8xf32, #tpu.memory_space<vmem>>, vector<1x1x16x8xf32>,
    %28 = vector.extract_strided_slice %3 {offsets = [0, 48], sizes = [16, 8], strides = [1, 1]} : vector<16x96xf32> to vector<16x8xf32>
    %c0_23 = arith.constant 0 : index
    %c6 = arith.constant 6 : index
    %c0_24 = arith.constant 0 : index
    %c0_25 = arith.constant 0 : index
    %29 = vector.load %arg5[%c0_23, %c6, %c0_24, %c0_25] : memref<1x12x16x8xf32, #tpu.memory_space<vmem>>, vector<1x1x16x8xf32>
    %30 = vector.shape_cast %29 : vector<1x1x16x8xf32> to vector<16x8xf32>
    %31 = vector.shape_cast %28 : vector<16x8xf32> to vector<1x1x16x8xf32>
    tpu.vector_store %arg5[%c0_23, %c6, %c0_24, %c0_25], %31 {strides = array<i32>} : memref<1x12x16x8xf32, #tpu.memory_space<vmem>>, vector<1x1x16x8xf32>,
    %32 = vector.extract_strided_slice %3 {offsets = [0, 56], sizes = [16, 8], strides = [1, 1]} : vector<16x96xf32> to vector<16x8xf32>
    %c0_26 = arith.constant 0 : index
    %c7 = arith.constant 7 : index
    %c0_27 = arith.constant 0 : index
    %c0_28 = arith.constant 0 : index
    %33 = vector.load %arg5[%c0_26, %c7, %c0_27, %c0_28] : memref<1x12x16x8xf32, #tpu.memory_space<vmem>>, vector<1x1x16x8xf32>
    %34 = vector.shape_cast %33 : vector<1x1x16x8xf32> to vector<16x8xf32>
    %35 = vector.shape_cast %32 : vector<16x8xf32> to vector<1x1x16x8xf32>
    tpu.vector_store %arg5[%c0_26, %c7, %c0_27, %c0_28], %35 {strides = array<i32>} : memref<1x12x16x8xf32, #tpu.memory_space<vmem>>, vector<1x1x16x8xf32>,
    %36 = vector.extract_strided_slice %3 {offsets = [0, 64], sizes = [16, 8], strides = [1, 1]} : vector<16x96xf32> to vector<16x8xf32>
    %c0_29 = arith.constant 0 : index
    %c8 = arith.constant 8 : index
    %c0_30 = arith.constant 0 : index
    %c0_31 = arith.constant 0 : index
    %37 = vector.load %arg5[%c0_29, %c8, %c0_30, %c0_31] : memref<1x12x16x8xf32, #tpu.memory_space<vmem>>, vector<1x1x16x8xf32>
    %38 = vector.shape_cast %37 : vector<1x1x16x8xf32> to vector<16x8xf32>
    %39 = vector.shape_cast %36 : vector<16x8xf32> to vector<1x1x16x8xf32>
    tpu.vector_store %arg5[%c0_29, %c8, %c0_30, %c0_31], %39 {strides = array<i32>} : memref<1x12x16x8xf32, #tpu.memory_space<vmem>>, vector<1x1x16x8xf32>,
    %40 = vector.extract_strided_slice %3 {offsets = [0, 72], sizes = [16, 8], strides = [1, 1]} : vector<16x96xf32> to vector<16x8xf32>
    %c0_32 = arith.constant 0 : index
    %c9 = arith.constant 9 : index
    %c0_33 = arith.constant 0 : index
    %c0_34 = arith.constant 0 : index
    %41 = vector.load %arg5[%c0_32, %c9, %c0_33, %c0_34] : memref<1x12x16x8xf32, #tpu.memory_space<vmem>>, vector<1x1x16x8xf32>
    %42 = vector.shape_cast %41 : vector<1x1x16x8xf32> to vector<16x8xf32>
    %43 = vector.shape_cast %40 : vector<16x8xf32> to vector<1x1x16x8xf32>
    tpu.vector_store %arg5[%c0_32, %c9, %c0_33, %c0_34], %43 {strides = array<i32>} : memref<1x12x16x8xf32, #tpu.memory_space<vmem>>, vector<1x1x16x8xf32>,
    %44 = vector.extract_strided_slice %3 {offsets = [0, 80], sizes = [16, 8], strides = [1, 1]} : vector<16x96xf32> to vector<16x8xf32>
    %c0_35 = arith.constant 0 : index
    %c10 = arith.constant 10 : index
    %c0_36 = arith.constant 0 : index
    %c0_37 = arith.constant 0 : index
    %45 = vector.load %arg5[%c0_35, %c10, %c0_36, %c0_37] : memref<1x12x16x8xf32, #tpu.memory_space<vmem>>, vector<1x1x16x8xf32>
    %46 = vector.shape_cast %45 : vector<1x1x16x8xf32> to vector<16x8xf32>
    %47 = vector.shape_cast %44 : vector<16x8xf32> to vector<1x1x16x8xf32>
    tpu.vector_store %arg5[%c0_35, %c10, %c0_36, %c0_37], %47 {strides = array<i32>} : memref<1x12x16x8xf32, #tpu.memory_space<vmem>>, vector<1x1x16x8xf32>,
    %48 = vector.extract_strided_slice %3 {offsets = [0, 88], sizes = [16, 8], strides = [1, 1]} : vector<16x96xf32> to vector<16x8xf32>
    %c0_38 = arith.constant 0 : index
    %c11 = arith.constant 11 : index
    %c0_39 = arith.constant 0 : index
    %c0_40 = arith.constant 0 : index
    %49 = vector.load %arg5[%c0_38, %c11, %c0_39, %c0_40] : memref<1x12x16x8xf32, #tpu.memory_space<vmem>>, vector<1x1x16x8xf32>
    %50 = vector.shape_cast %49 : vector<1x1x16x8xf32> to vector<16x8xf32>
    %51 = vector.shape_cast %48 : vector<16x8xf32> to vector<1x1x16x8xf32>
    tpu.vector_store %arg5[%c0_38, %c11, %c0_39, %c0_40], %51 {strides = array<i32>} : memref<1x12x16x8xf32, #tpu.memory_space<vmem>>, vector<1x1x16x8xf32>,
    return
  }
  func.func @transform_0(%arg0: i32, %arg1: i32, %arg2: i32) -> (i32, i32, i32) {
    %c0_i32 = arith.constant 0 : i32
    %c0_i32_0 = arith.constant 0 : i32
    return %arg0, %arg2, %c0_i32 : i32, i32, i32
  }
  func.func @transform_1(%arg0: i32, %arg1: i32, %arg2: i32) -> (i32, i32) {
    %c0_i32 = arith.constant 0 : i32
    %c0_i32_0 = arith.constant 0 : i32
    return %c0_i32, %arg1 : i32, i32
  }
  func.func @transform_2(%arg0: i32, %arg1: i32, %arg2: i32) -> (i32, i32, i32, i32) {
    %c0_i32 = arith.constant 0 : i32
    %c0_i32_0 = arith.constant 0 : i32
    return %arg0, %arg1, %arg2, %c0_i32 : i32, i32, i32, i32
  }
}

module attributes {stable_mosaic.version = 11 : i64} {
  func.func @_qkv_proj_kernel(%arg0: i32, %arg1: i32, %arg2: i32, %arg3: memref<1x16x32xf32, #tpu.memory_space<vmem>>, %arg4: memref<32x96xf32, #tpu.memory_space<vmem>>, %arg5: memref<1x12x16x8xf32, #tpu.memory_space<vmem>>) attributes {dimension_semantics = [#tpu.dimension_semantics<parallel>, #tpu.dimension_semantics<parallel>, #tpu.dimension_semantics<parallel>], iteration_bounds = array<i64: 2, 1, 1>, scalar_prefetch = 0 : i64, scratch_operands = 0 : i64, tpu.core_type = #tpu.core_type<tc>, window_params = [{transform_indices = @transform_0, window_bounds = array<i64: 1, 16, 32>}, {transform_indices = @transform_1, window_bounds = array<i64: 32, 96>}, {transform_indices = @transform_2, window_bounds = array<i64: 1, 12, 16, 8>}]} {
    %c0 = arith.constant 0 : index
    %c0_0 = arith.constant 0 : index
    %c0_1 = arith.constant 0 : index
    %0 = vector.load %arg3[%c0, %c0_0, %c0_1] : memref<1x16x32xf32, #tpu.memory_space<vmem>>, vector<1x16x32xf32>
    %1 = vector.shape_cast %0 : vector<1x16x32xf32> to vector<16x32xf32>
    %c0_2 = arith.constant 0 : index
    %c0_3 = arith.constant 0 : index
    %2 = vector.load %arg4[%c0_2, %c0_3] : memref<32x96xf32, #tpu.memory_space<vmem>>, vector<32x96xf32>
    %cst = arith.constant dense<0.000000e+00> : vector<16x96xf32>
    %3 = tpu.matmul %1, %2, %cst {dimension_numbers = #tpu.dot_dimension_numbers<[1], [0], [0], [1], [0, 0, 1, 1], [], []>} : vector<16x32xf32>, vector<32x96xf32>, vector<16x96xf32> -> vector<16x96xf32>
    %4 = vector.extract_strided_slice %3 {offsets = [0, 0], sizes = [16, 8], strides = [1, 1]} : vector<16x96xf32> to vector<16x8xf32>
    %c0_4 = arith.constant 0 : index
    %c0_5 = arith.constant 0 : index
    %c0_6 = arith.constant 0 : index
    %c0_7 = arith.constant 0 : index
    %5 = vector.load %arg5[%c0_4, %c0_5, %c0_6, %c0_7] : memref<1x12x16x8xf32, #tpu.memory_space<vmem>>, vector<1x1x16x8xf32>
    %6 = vector.shape_cast %5 : vector<1x1x16x8xf32> to vector<16x8xf32>
    %7 = vector.shape_cast %4 : vector<16x8xf32> to vector<1x1x16x8xf32>
    tpu.vector_store %arg5[%c0_4, %c0_5, %c0_6, %c0_7], %7 {strides = array<i32>} : memref<1x12x16x8xf32, #tpu.memory_space<vmem>>, vector<1x1x16x8xf32>,
    %8 = vector.extract_strided_slice %3 {offsets = [0, 8], sizes = [16, 8], strides = [1, 1]} : vector<16x96xf32> to vector<16x8xf32>
    %c0_8 = arith.constant 0 : index
    %c1 = arith.constant 1 : index
    %c0_9 = arith.constant 0 : index
    %c0_10 = arith.constant 0 : index
    %9 = vector.load %arg5[%c0_8, %c1, %c0_9, %c0_10] : memref<1x12x16x8xf32, #tpu.memory_space<vmem>>, vector<1x1x16x8xf32>
    %10 = vector.shape_cast %9 : vector<1x1x16x8xf32> to vector<16x8xf32>
    %11 = vector.shape_cast %8 : vector<16x8xf32> to vector<1x1x16x8xf32>
    tpu.vector_store %arg5[%c0_8, %c1, %c0_9, %c0_10], %11 {strides = array<i32>} : memref<1x12x16x8xf32, #tpu.memory_space<vmem>>, vector<1x1x16x8xf32>,
    %12 = vector.extract_strided_slice %3 {offsets = [0, 16], sizes = [16, 8], strides = [1, 1]} : vector<16x96xf32> to vector<16x8xf32>
    %c0_11 = arith.constant 0 : index
    %c2 = arith.constant 2 : index
    %c0_12 = arith.constant 0 : index
    %c0_13 = arith.constant 0 : index
    %13 = vector.load %arg5[%c0_11, %c2, %c0_12, %c0_13] : memref<1x12x16x8xf32, #tpu.memory_space<vmem>>, vector<1x1x16x8xf32>
    %14 = vector.shape_cast %13 : vector<1x1x16x8xf32> to vector<16x8xf32>
    %15 = vector.shape_cast %12 : vector<16x8xf32> to vector<1x1x16x8xf32>
    tpu.vector_store %arg5[%c0_11, %c2, %c0_12, %c0_13], %15 {strides = array<i32>} : memref<1x12x16x8xf32, #tpu.memory_space<vmem>>, vector<1x1x16x8xf32>,
    %16 = vector.extract_strided_slice %3 {offsets = [0, 24], sizes = [16, 8], strides = [1, 1]} : vector<16x96xf32> to vector<16x8xf32>
    %c0_14 = arith.constant 0 : index
    %c3 = arith.constant 3 : index
    %c0_15 = arith.constant 0 : index
    %c0_16 = arith.constant 0 : index
    %17 = vector.load %arg5[%c0_14, %c3, %c0_15, %c0_16] : memref<1x12x16x8xf32, #tpu.memory_space<vmem>>, vector<1x1x16x8xf32>
    %18 = vector.shape_cast %17 : vector<1x1x16x8xf32> to vector<16x8xf32>
    %19 = vector.shape_cast %16 : vector<16x8xf32> to vector<1x1x16x8xf32>
    tpu.vector_store %arg5[%c0_14, %c3, %c0_15, %c0_16], %19 {strides = array<i32>} : memref<1x12x16x8xf32, #tpu.memory_space<vmem>>, vector<1x1x16x8xf32>,
    %20 = vector.extract_strided_slice %3 {offsets = [0, 32], sizes = [16, 8], strides = [1, 1]} : vector<16x96xf32> to vector<16x8xf32>
    %c0_17 = arith.constant 0 : index
    %c4 = arith.constant 4 : index
    %c0_18 = arith.constant 0 : index
    %c0_19 = arith.constant 0 : index
    %21 = vector.load %arg5[%c0_17, %c4, %c0_18, %c0_19] : memref<1x12x16x8xf32, #tpu.memory_space<vmem>>, vector<1x1x16x8xf32>
    %22 = vector.shape_cast %21 : vector<1x1x16x8xf32> to vector<16x8xf32>
    %23 = vector.shape_cast %20 : vector<16x8xf32> to vector<1x1x16x8xf32>
    tpu.vector_store %arg5[%c0_17, %c4, %c0_18, %c0_19], %23 {strides = array<i32>} : memref<1x12x16x8xf32, #tpu.memory_space<vmem>>, vector<1x1x16x8xf32>,
    %24 = vector.extract_strided_slice %3 {offsets = [0, 40], sizes = [16, 8], strides = [1, 1]} : vector<16x96xf32> to vector<16x8xf32>
    %c0_20 = arith.constant 0 : index
    %c5 = arith.constant 5 : index
    %c0_21 = arith.constant 0 : index
    %c0_22 = arith.constant 0 : index
    %25 = vector.load %arg5[%c0_20, %c5, %c0_21, %c0_22] : memref<1x12x16x8xf32, #tpu.memory_space<vmem>>, vector<1x1x16x8xf32>
    %26 = vector.shape_cast %25 : vector<1x1x16x8xf32> to vector<16x8xf32>
    %27 = vector.shape_cast %24 : vector<16x8xf32> to vector<1x1x16x8xf32>
    tpu.vector_store %arg5[%c0_20, %c5, %c0_21, %c0_22], %27 {strides = array<i32>} : memref<1x12x16x8xf32, #tpu.memory_space<vmem>>, vector<1x1x16x8xf32>,
    %28 = vector.extract_strided_slice %3 {offsets = [0, 48], sizes = [16, 8], strides = [1, 1]} : vector<16x96xf32> to vector<16x8xf32>
    %c0_23 = arith.constant 0 : index
    %c6 = arith.constant 6 : index
    %c0_24 = arith.constant 0 : index
    %c0_25 = arith.constant 0 : index
    %29 = vector.load %arg5[%c0_23, %c6, %c0_24, %c0_25] : memref<1x12x16x8xf32, #tpu.memory_space<vmem>>, vector<1x1x16x8xf32>
    %30 = vector.shape_cast %29 : vector<1x1x16x8xf32> to vector<16x8xf32>
    %31 = vector.shape_cast %28 : vector<16x8xf32> to vector<1x1x16x8xf32>
    tpu.vector_store %arg5[%c0_23, %c6, %c0_24, %c0_25], %31 {strides = array<i32>} : memref<1x12x16x8xf32, #tpu.memory_space<vmem>>, vector<1x1x16x8xf32>,
    %32 = vector.extract_strided_slice %3 {offsets = [0, 56], sizes = [16, 8], strides = [1, 1]} : vector<16x96xf32> to vector<16x8xf32>
    %c0_26 = arith.constant 0 : index
    %c7 = arith.constant 7 : index
    %c0_27 = arith.constant 0 : index
    %c0_28 = arith.constant 0 : index
    %33 = vector.load %arg5[%c0_26, %c7, %c0_27, %c0_28] : memref<1x12x16x8xf32, #tpu.memory_space<vmem>>, vector<1x1x16x8xf32>
    %34 = vector.shape_cast %33 : vector<1x1x16x8xf32> to vector<16x8xf32>
    %35 = vector.shape_cast %32 : vector<16x8xf32> to vector<1x1x16x8xf32>
    tpu.vector_store %arg5[%c0_26, %c7, %c0_27, %c0_28], %35 {strides = array<i32>} : memref<1x12x16x8xf32, #tpu.memory_space<vmem>>, vector<1x1x16x8xf32>,
    %36 = vector.extract_strided_slice %3 {offsets = [0, 64], sizes = [16, 8], strides = [1, 1]} : vector<16x96xf32> to vector<16x8xf32>
    %c0_29 = arith.constant 0 : index
    %c8 = arith.constant 8 : index
    %c0_30 = arith.constant 0 : index
    %c0_31 = arith.constant 0 : index
    %37 = vector.load %arg5[%c0_29, %c8, %c0_30, %c0_31] : memref<1x12x16x8xf32, #tpu.memory_space<vmem>>, vector<1x1x16x8xf32>
    %38 = vector.shape_cast %37 : vector<1x1x16x8xf32> to vector<16x8xf32>
    %39 = vector.shape_cast %36 : vector<16x8xf32> to vector<1x1x16x8xf32>
    tpu.vector_store %arg5[%c0_29, %c8, %c0_30, %c0_31], %39 {strides = array<i32>} : memref<1x12x16x8xf32, #tpu.memory_space<vmem>>, vector<1x1x16x8xf32>,
    %40 = vector.extract_strided_slice %3 {offsets = [0, 72], sizes = [16, 8], strides = [1, 1]} : vector<16x96xf32> to vector<16x8xf32>
    %c0_32 = arith.constant 0 : index
    %c9 = arith.constant 9 : index
    %c0_33 = arith.constant 0 : index
    %c0_34 = arith.constant 0 : index
    %41 = vector.load %arg5[%c0_32, %c9, %c0_33, %c0_34] : memref<1x12x16x8xf32, #tpu.memory_space<vmem>>, vector<1x1x16x8xf32>
    %42 = vector.shape_cast %41 : vector<1x1x16x8xf32> to vector<16x8xf32>
    %43 = vector.shape_cast %40 : vector<16x8xf32> to vector<1x1x16x8xf32>
    tpu.vector_store %arg5[%c0_32, %c9, %c0_33, %c0_34], %43 {strides = array<i32>} : memref<1x12x16x8xf32, #tpu.memory_space<vmem>>, vector<1x1x16x8xf32>,
    %44 = vector.extract_strided_slice %3 {offsets = [0, 80], sizes = [16, 8], strides = [1, 1]} : vector<16x96xf32> to vector<16x8xf32>
    %c0_35 = arith.constant 0 : index
    %c10 = arith.constant 10 : index
    %c0_36 = arith.constant 0 : index
    %c0_37 = arith.constant 0 : index
    %45 = vector.load %arg5[%c0_35, %c10, %c0_36, %c0_37] : memref<1x12x16x8xf32, #tpu.memory_space<vmem>>, vector<1x1x16x8xf32>
    %46 = vector.shape_cast %45 : vector<1x1x16x8xf32> to vector<16x8xf32>
    %47 = vector.shape_cast %44 : vector<16x8xf32> to vector<1x1x16x8xf32>
    tpu.vector_store %arg5[%c0_35, %c10, %c0_36, %c0_37], %47 {strides = array<i32>} : memref<1x12x16x8xf32, #tpu.memory_space<vmem>>, vector<1x1x16x8xf32>,
    %48 = vector.extract_strided_slice %3 {offsets = [0, 88], sizes = [16, 8], strides = [1, 1]} : vector<16x96xf32> to vector<16x8xf32>
    %c0_38 = arith.constant 0 : index
    %c11 = arith.constant 11 : index
    %c0_39 = arith.constant 0 : index
    %c0_40 = arith.constant 0 : index
    %49 = vector.load %arg5[%c0_38, %c11, %c0_39, %c0_40] : memref<1x12x16x8xf32, #tpu.memory_space<vmem>>, vector<1x1x16x8xf32>
    %50 = vector.shape_cast %49 : vector<1x1x16x8xf32> to vector<16x8xf32>
    %51 = vector.shape_cast %48 : vector<16x8xf32> to vector<1x1x16x8xf32>
    tpu.vector_store %arg5[%c0_38, %c11, %c0_39, %c0_40], %51 {strides = array<i32>} : memref<1x12x16x8xf32, #tpu.memory_space<vmem>>, vector<1x1x16x8xf32>,
    return
  }
  func.func @transform_0(%arg0: i32, %arg1: i32, %arg2: i32) -> (i32, i32, i32) {
    %c0_i32 = arith.constant 0 : i32
    %c0_i32_0 = arith.constant 0 : i32
    return %arg0, %arg2, %c0_i32 : i32, i32, i32
  }
  func.func @transform_1(%arg0: i32, %arg1: i32, %arg2: i32) -> (i32, i32) {
    %c0_i32 = arith.constant 0 : i32
    %c0_i32_0 = arith.constant 0 : i32
    return %c0_i32, %arg1 : i32, i32
  }
  func.func @transform_2(%arg0: i32, %arg1: i32, %arg2: i32) -> (i32, i32, i32, i32) {
    %c0_i32 = arith.constant 0 : i32
    %c0_i32_0 = arith.constant 0 : i32
    return %arg0, %arg1, %arg2, %c0_i32 : i32, i32, i32, i32
  }
}

</mosaic_0001>

<llo_original>
// kernel: tpu_custom_call.1
$region0: #{tpu_custom_call.1}
  #allocation0 [shape = 'u32[]', space=smem, size = 0x4, offset = 0x4, fixed_abs, tag = 'smem constant byte address 0x4 - core index']
  #allocation1 [shape = 'u32[144,128]{1,0:T(1,128)}', space=vmem, size = 0x12000, scoped, tag = 'internal scratch']
  %s0 = inlined_call_operand.hbm [shape: f32[2,16,32], index: 0, kind: input, shape index: {}]
  %s1 = inlined_call_operand.hbm [shape: f32[32,96], index: 1, kind: input, shape index: {}]
  %s2 = inlined_call_operand.vmem [shape: f32[2,12,16,8], index: 2, kind: output, shape index: {}]
  %s3 = sld [smem:[#allocation0]]
  $region49: #{tpu_custom_call.1} parent=0
    _
  %s5 = ssub.s32 1, %s3
  %s6 = scalar_select 0, %s5, %s3
  $region1: #{tpu_custom_call.1} parent=0
    #allocation2 [shape = 'u8[16384]{0}', space=vmem, size = 0x4000, scoped, tag = 'input window, operand 0']
    #allocation3 [shape = 's32[2]{0}', space=sflag, size = 0x8, scoped, tag = 'scoped memory for tpu_custom_call.1']
    #allocation4 [shape = 'u8[16384]{0}', space=vmem, size = 0x4000, scoped, tag = 'input window, operand 1, single buffered']
    #allocation5 [shape = 's32[1]{0}', space=sflag, size = 0x4, scoped, tag = 'scoped memory for tpu_custom_call.1']
    %7 = vsyncpa [#allocation3], 0
    %s8 = scalar_lea.sflag [#allocation3], 1
    %9 = vsyncpa %s8, 0
    %10 = vsyncpa [#allocation5], 0
    loop: start=0, step=1, limit=4
    $region2: #{tpu_custom_call.1} parent=1 // loop_pre_header
      _
    $region3: #{tpu_custom_call.1} parent=1 // loop_header
      %s12 = sphi 0, %s16
      %p13 = scmp.ge.s32.totalorder %s12, 4
      %s19 = sphi 0, %s38
      %s20 = sphi 0, %s34
      %s21 = sphi 0, %s30
      %s22 = sphi 0, %s19
      %s23 = sphi 0, %s20
      %s24 = sphi 0, %s21
      %s25 = sphi 0, %s22
      %s26 = sphi 0, %s23
      %s27 = sphi 0, %s24
      %s43 = sphi 0, %s45
      %s46 = sphi 0, %s43
      %s47 = sphi 0, %s46
      %s63 = sphi 0, %s47
      %s69 = sphi 0, %s71
      %s72 = sphi 0, %s69
      %s73 = sphi 0, %s72
      %s89 = sphi 0, %s73
      %s99 = sphi 0, %s101
      %s102 = sphi 0, %s99
      %s103 = sphi 0, %s102
      %s119 = sphi 0, %s103
    $region4: #{tpu_custom_call.1} parent=1 // loop_header_branch
      %15 = sbr.rel (%p13) target = $region8
    $region5: #{tpu_custom_call.1} parent=1 // loop_body
      %s17 = ssub.s32 %s12, 1
      %s18 = ssub.s32 %s12, 2
      %s28 = sadd.s32 1, %s21
      %p29 = scmp.ge.s32.totalorder %s28, 1
      %s30 = scalar_select %p29, 0, %s28
      %s31 = sadd.s32 1, %s20
      %s32 = scalar_select %p29, %s31, %s20
      %p33 = scmp.ge.s32.totalorder %s32, 1
      %s34 = scalar_select %p33, 0, %s32
      %s35 = sadd.s32 1, %s19
      %s36 = scalar_select %p33, %s35, %s19
      %p37 = scmp.ge.s32.totalorder %s36, 2
      %s38 = scalar_select %p37, 0, %s36
      %s39 = ssub.s32 %s19, %s38
      %s40 = ssub.s32 %s21, %s30
      %s41 = sor.u32 %s39, %s40
      %p42 = scmp.eq.s32.totalorder %s41, 0
      %s44 = sadd.s32 %s43, 1
      %s45 = scalar_select %p42, %s43, %s44
      %p48 = pneg %p42
      %p49 = scmp.eq.s32.totalorder %s12, 1
      %p50 = por %p48, %p49
      %p51 = scmp.ne.s32.totalorder %s43, %s46
      %p52 = scmp.eq.s32.totalorder %s12, 0
      %p53 = por %p51, %p52
      %p54 = scmp.ne.s32.totalorder %s43, %s46
      %p55 = scmp.eq.s32.totalorder %s17, 1
      %p56 = por %p54, %p55
      %p57 = scmp.ne.s32.totalorder %s46, %s47
      %p58 = scmp.eq.s32.totalorder %s17, 0
      %p59 = por %p57, %p58
      %p60 = scmp.ne.s32.totalorder %s46, %s47
      %p61 = scmp.eq.s32.totalorder %s18, 1
      %p62 = por %p60, %p61
      %p64 = scmp.ne.s32.totalorder %s47, %s63
      %p65 = scmp.eq.s32.totalorder %s18, 0
      %p66 = por %p64, %p65
      %s67 = ssub.s32 %s20, %s34
      %p68 = scmp.eq.s32.totalorder %s67, 0
      %s70 = sadd.s32 %s69, 1
      %s71 = scalar_select %p68, %s69, %s70
      %p74 = pneg %p68
      %p75 = scmp.eq.s32.totalorder %s12, 1
      %p76 = por %p74, %p75
      %p77 = scmp.ne.s32.totalorder %s69, %s72
      %p78 = scmp.eq.s32.totalorder %s12, 0
      %p79 = por %p77, %p78
      %p80 = scmp.ne.s32.totalorder %s69, %s72
      %p81 = scmp.eq.s32.totalorder %s17, 1
      %p82 = por %p80, %p81
      %p83 = scmp.ne.s32.totalorder %s72, %s73
      %p84 = scmp.eq.s32.totalorder %s17, 0
      %p85 = por %p83, %p84
      %p86 = scmp.ne.s32.totalorder %s72, %s73
      %p87 = scmp.eq.s32.totalorder %s18, 1
      %p88 = por %p86, %p87
      %p90 = scmp.ne.s32.totalorder %s73, %s89
      %p91 = scmp.eq.s32.totalorder %s18, 0
      %p92 = por %p90, %p91
      %s93 = ssub.s32 %s19, %s38
      %s94 = ssub.s32 %s20, %s34
      %s95 = sor.u32 %s93, %s94
      %s96 = ssub.s32 %s21, %s30
      %s97 = sor.u32 %s95, %s96
      %p98 = scmp.eq.s32.totalorder %s97, 0
      %s100 = sadd.s32 %s99, 1
      %s101 = scalar_select %p98, %s99, %s100
      %p104 = pneg %p98
      %p105 = scmp.eq.s32.totalorder %s12, 1
      %p106 = por %p104, %p105
      %p107 = scmp.ne.s32.totalorder %s99, %s102
      %p108 = scmp.eq.s32.totalorder %s12, 0
      %p109 = por %p107, %p108
      %p110 = scmp.ne.s32.totalorder %s99, %s102
      %p111 = scmp.eq.s32.totalorder %s17, 1
      %p112 = por %p110, %p111
      %p113 = scmp.ne.s32.totalorder %s102, %s103
      %p114 = scmp.eq.s32.totalorder %s17, 0
      %p115 = por %p113, %p114
      %p116 = scmp.ne.s32.totalorder %s102, %s103
      %p117 = scmp.eq.s32.totalorder %s18, 1
      %p118 = por %p116, %p117
      %p120 = scmp.ne.s32.totalorder %s103, %s119
      %p121 = scmp.eq.s32.totalorder %s18, 0
      %p122 = por %p120, %p121
      %p123 = scmp.le.s32.totalorder 1, %s12
      %p124 = scmp.lt.s32.totalorder %s12, 3
      %p125 = pnand %p123, %p124
      %p126 = pneg %p125
      // Predicated region
      $region9: #{tpu_custom_call.1} parent=5 // pred_check
        _
      $region10: #{tpu_custom_call.1} parent=5 // pred_check_branch
        %128 = sbr.rel (%p125) target = $region12
      $region11: #{tpu_custom_call.1} parent=5 // pred_region
        %s129 = ssub.s32 %s12, 1
        // Predicated region
        $region13: #{tpu_custom_call.1} parent=11 // pred_check
          %p130 = pneg %p85
        $region14: #{tpu_custom_call.1} parent=11 // pred_check_branch
          %132 = sbr.rel (%p130) target = $region16
        $region15: #{tpu_custom_call.1} parent=11 // pred_region
          %s134 = ssub.s32 512, 512
          %135 = vsyncadd [#allocation5], %s134
          %s136 = smul.addr %s23, 128
          %s137 = scalar_lea.hbm %s1, %s136
          %s138 = sshll.u32 [#allocation4], 4
          %s139 = int_to_ptr.vmem [resolvable:$true] %s138
          %144 = dma.hbm_to_vmem [thread:$0]  %s137, 512, %s139, [#allocation5], 128, 128, 8
        $region16: #{tpu_custom_call.1} parent=11 // pred_fallthru
          _
      $region12: #{tpu_custom_call.1} parent=5 // pred_fallthru
        _
      %p145 = scmp.lt.s32.totalorder %s12, 2
      // Predicated region
      $region17: #{tpu_custom_call.1} parent=5 // pred_check
        %p146 = pneg %p145
      $region18: #{tpu_custom_call.1} parent=5 // pred_check_branch
        %148 = sbr.rel (%p146) target = $region20
      $region19: #{tpu_custom_call.1} parent=5 // pred_region
        // Predicated region
        $region21: #{tpu_custom_call.1} parent=19 // pred_check
          %p149 = pneg %p53
        $region22: #{tpu_custom_call.1} parent=19 // pred_check_branch
          %151 = sbr.rel (%p149) target = $region24
        $region23: #{tpu_custom_call.1} parent=19 // pred_region
          %s152 = sand.u32 %s43, 1
          %s153 = scalar_lea.sflag [#allocation3], %s152
          %s154 = sand.u32 %s43, 1
          %s155 = smul.addr %s154, 16
          %s156 = scalar_lea.vmem [#allocation2], %s155
          %s157 = smul.u32 2, %s21
          %s159 = ssub.s32 256, 256
          %160 = vsyncadd %s153, %s159
          %s161 = smul.addr %s19, 2
          %s162 = sadd.s32 %s157, %s161
          %s163 = smul.addr %s162, 128
          %s164 = scalar_lea.hbm %s0, %s163
          %s165 = sshll.u32 %s156, 4
          %s166 = int_to_ptr.vmem [resolvable:$true] %s165
          %171 = dma.hbm_to_vmem [thread:$0]  %s164, 256, %s166, %s153, 128, 128, 8
        $region24: #{tpu_custom_call.1} parent=19 // pred_fallthru
          _
      $region20: #{tpu_custom_call.1} parent=5 // pred_fallthru
        _
      %p172 = scmp.le.s32.totalorder 1, %s12
      %p173 = scmp.lt.s32.totalorder %s12, 3
      %p174 = pnand %p172, %p173
      %p175 = pneg %p174
      // Predicated region
      $region25: #{tpu_custom_call.1} parent=5 // pred_check
        _
      $region26: #{tpu_custom_call.1} parent=5 // pred_check_branch
        %177 = sbr.rel (%p174) target = $region28
      $region27: #{tpu_custom_call.1} parent=5 // pred_region
        %s178 = ssub.s32 %s12, 1
        %s179 = sand.u32 %s46, 1
        %s180 = scalar_lea.sflag [#allocation3], %s179
        %s181 = sand.u32 %s46, 1
        %s182 = smul.addr %s181, 16
        %s183 = scalar_lea.vmem [#allocation2], %s182
        // Predicated region
        $region29: #{tpu_custom_call.1} parent=27 // pred_check
          %p184 = pneg %p59
        $region30: #{tpu_custom_call.1} parent=27 // pred_check_branch
          %186 = sbr.rel (%p184) target = $region32
        $region31: #{tpu_custom_call.1} parent=27 // pred_region
          %187 = dma.done %s180, 256
        $region32: #{tpu_custom_call.1} parent=27 // pred_fallthru
          _
        // Predicated region
        $region33: #{tpu_custom_call.1} parent=27 // pred_check
          %p188 = pneg %p85
        $region34: #{tpu_custom_call.1} parent=27 // pred_check_branch
          %190 = sbr.rel (%p188) target = $region36
        $region35: #{tpu_custom_call.1} parent=27 // pred_region
          %191 = dma.done [#allocation5], 512
        $region36: #{tpu_custom_call.1} parent=27 // pred_fallthru
          _
        %s192 = sand.u32 %s46, 1
        %s193 = scalar_lea.sflag [#allocation3], %s192
        %s194 = sand.u32 %s46, 1
        %s195 = smul.addr %s194, 16
        %s196 = scalar_lea.vmem [#allocation2], %s195
        %p197 = pneg %p59
        %p198 = pneg %p56
        %p199 = pneg %p85
        %p200 = pneg %p82
        %p201 = pneg %p115
        %p202 = pneg %p112
        %s203 = smul.u32 12, %s23
        %s204 = smul.u32 2, %s24
        %p205 = scmp.lt.s32.totalorder %s22, 1
        %s206 = scalar_select %p205, %s22, 1
        %p207 = scmp.lt.s32.totalorder %s203, 11
        %s208 = scalar_select %p207, %s203, 11
        %p209 = scmp.lt.s32.totalorder %s204, 1
        %s210 = scalar_select %p209, %s204, 1
        %s211 = smul.addr %s208, 2
        %s212 = sadd.s32 %s210, %s211
        %s213 = smul.addr %s206, 24
        %s214 = sadd.s32 %s212, %s213
        %s215 = smul.addr %s214, 8
        %s216 = scalar_lea.vmem %s2, %s215
        %s217 = smul.u32 2, %s24
        %s218 = smul.u32 12, %s23
        %s219 = smul.u32 2, %s24
        %p220 = scmp.lt.s32.totalorder %s22, 1
        %s221 = scalar_select %p220, %s22, 1
        %p222 = scmp.lt.s32.totalorder %s218, 11
        %s223 = scalar_select %p222, %s218, 11
        %p224 = scmp.lt.s32.totalorder %s219, 1
        %s225 = scalar_select %p224, %s219, 1
        %s226 = smul.addr %s223, 2
        %s227 = sadd.s32 %s225, %s226
        %s228 = smul.addr %s221, 24
        %s229 = sadd.s32 %s227, %s228
        %s230 = smul.addr %s229, 8
        %s231 = scalar_lea.vmem %s2, %s230
        %s232 = smul.u32 12, %s23
        %s233 = smul.u32 2, %s24
        %v234 = vld [vmem:[%s183] sm:$0xff]
        %v235 = vld [vmem:[%s183 + $0x8] sm:$0xff]
        %v236 = vld [vmem:[#allocation4] sm:$0xff]
        %v237 = vld [vmem:[#allocation4 + $0x8] sm:$0xff]
        %v238 = vld [vmem:[#allocation4 + $0x10] sm:$0xff]
        %v239 = vld [vmem:[#allocation4 + $0x18] sm:$0xff]
        %vm240 = vcmask 261120
        %v242 = vsel %vm240, %v234, 0
        %v245 = vsel %vm240, %v235, 0
        %247 = vmatprep.subr.mxu0 0.0
        %248 = vmatpush1.msra.mxu0 %v236
        %249 = vmatprep.subr.mxu0 0.0
        %250 = vmatpush1.msra.mxu0 %v237
        %251 = vmatprep.subr.mxu0 0.0
        %252 = vmatpush1.msra.mxu0 %v238
        %253 = vmatprep.subr.mxu0 0.0
        %254 = vmatpush1.msra.mxu0 %v239
        %255 = vmatprep.subr.mxu0 0.0
        %256 = vmatpush1.msra.mxu0 0.0
        %257 = vmatprep.subr.mxu0 0.0
        %258 = vmatpush1.msra.mxu0 0.0
        %259 = vmatprep.subr.mxu0 0.0
        %260 = vmatpush1.msra.mxu0 0.0
        %261 = vmatprep.subr.mxu0 0.0
        %262 = vmatpush1.msra.mxu0 0.0
        %263 = vmatprep.subr.mxu0 0.0
        %264 = vmatpush1.msra.mxu0 0.0
        %265 = vmatprep.subr.mxu0 0.0
        %266 = vmatpush1.msra.mxu0 0.0
        %267 = vmatprep.subr.mxu0 0.0
        %268 = vmatpush1.msra.mxu0 0.0
        %269 = vmatprep.subr.mxu0 0.0
        %270 = vmatpush1.msra.mxu0 0.0
        %271 = vmatprep.subr.mxu0 0.0
        %272 = vmatpush1.msra.mxu0 0.0
        %273 = vmatprep.subr.mxu0 0.0
        %274 = vmatpush1.msra.mxu0 0.0
        %275 = vmatprep.subr.mxu0 0.0
        %276 = vmatpush1.msra.mxu0 0.0
        %277 = vmatprep.subr.mxu0 0.0
        %278 = vmatpush1.msra.mxu0 0.0
        %279 = vmatprep.subr.mxu0 0.0
        %280 = vmatpush1.msra.mxu0 0.0
        %281 = vmatprep.subr.mxu0 0.0
        %282 = vmatpush1.msra.mxu0 0.0
        %283 = vmatprep.subr.mxu0 0.0
        %284 = vmatpush1.msra.mxu0 0.0
        %285 = vmatprep.subr.mxu0 0.0
        %286 = vmatpush1.msra.mxu0 0.0
        %287 = vmatprep.subr.mxu0 0.0
        %288 = vmatpush1.msra.mxu0 0.0
        %289 = vmatprep.subr.mxu0 0.0
        %290 = vmatpush1.msra.mxu0 0.0
        %291 = vmatprep.subr.mxu0 0.0
        %292 = vmatpush1.msra.mxu0 0.0
        %293 = vmatprep.subr.mxu0 0.0
        %294 = vmatpush1.msra.mxu0 0.0
        %295 = vmatprep.subr.mxu0 0.0
        %296 = vmatpush1.msra.mxu0 0.0
        %297 = vmatprep.subr.mxu0 0.0
        %298 = vmatpush1.msra.mxu0 0.0
        %299 = vmatprep.subr.mxu0 0.0
        %300 = vmatpush1.msra.mxu0 0.0
        %301 = vmatprep.subr.mxu0 0.0
        %302 = vmatpush1.msra.mxu0 0.0
        %303 = vmatprep.subr.mxu0 0.0
        %304 = vmatpush1.msra.mxu0 0.0
        %305 = vmatprep.subr.mxu0 0.0
        %306 = vmatpush1.msra.mxu0 0.0
        %307 = vmatprep.subr.mxu0 0.0
        %308 = vmatpush1.msra.mxu0 0.0
        %309 = vmatprep.subr.mxu0 0.0
        %310 = vmatpush1.msra.mxu0 0.0
        %311 = vmatprep.mubr.f32.mxu0 0.0
        %312 = vmatmul.mubr.f32.gmra.mrb[0].mxu0 %v242
        %v313 = vpop.f32.mrb[0].mxu0
        %v314 = vadd.f32 0.0, %v313
        %v315 = vpop.f32.mrb[0].mxu0
        %316 = vmatprep.mubr.f32.mxu0 0.0
        %317 = vmatmul.mubr.f32.gmra.mrb[0].mxu0 %v245
        %v318 = vpop.f32.mrb[0].mxu0
        %v319 = vadd.f32 0.0, %v318
        %v320 = vpop.f32.mrb[0].mxu0
        %321 = vdwg.mxu0
        %vm322 = vcmask 64512
        %323 = vst.msk [vmem:[%s231] sm:$0xff] %vm322, %v314
        %324 = vst.msk [vmem:[%s231 + $0x8] sm:$0xff] %vm322, %v319
        %327 = vrot.lane.b32.xlu0 %v314, 120
        %v328 = vpop.permute.xlu0 %327
        %329 = vrot.lane.b32.xlu0 %v319, 120
        %v330 = vpop.permute.xlu0 %329
        %s333 = scalar_lea.vmem %s231, 16
        %334 = vst.msk [vmem:[%s333] sm:$0xff] %vm322, %v328
        %335 = vst.msk [vmem:[%s333 + $0x8] sm:$0xff] %vm322, %v330
        %336 = vrot.lane.b32.xlu0 %v314, 112
        %v337 = vpop.permute.xlu0 %336
        %338 = vrot.lane.b32.xlu0 %v319, 112
        %v339 = vpop.permute.xlu0 %338
        %s342 = scalar_lea.vmem %s231, 32
        %343 = vst.msk [vmem:[%s342] sm:$0xff] %vm322, %v337
        %344 = vst.msk [vmem:[%s342 + $0x8] sm:$0xff] %vm322, %v339
        %345 = vrot.lane.b32.xlu0 %v314, 104
        %v346 = vpop.permute.xlu0 %345
        %347 = vrot.lane.b32.xlu0 %v319, 104
        %v348 = vpop.permute.xlu0 %347
        %s351 = scalar_lea.vmem %s231, 48
        %352 = vst.msk [vmem:[%s351] sm:$0xff] %vm322, %v346
        %353 = vst.msk [vmem:[%s351 + $0x8] sm:$0xff] %vm322, %v348
        %354 = vrot.lane.b32.xlu0 %v314, 96
        %v355 = vpop.permute.xlu0 %354
        %356 = vrot.lane.b32.xlu0 %v319, 96
        %v357 = vpop.permute.xlu0 %356
        %s360 = scalar_lea.vmem %s231, 64
        %361 = vst.msk [vmem:[%s360] sm:$0xff] %vm322, %v355
        %362 = vst.msk [vmem:[%s360 + $0x8] sm:$0xff] %vm322, %v357
        %363 = vrot.lane.b32.xlu0 %v314, 88
        %v364 = vpop.permute.xlu0 %363
        %365 = vrot.lane.b32.xlu0 %v319, 88
        %v366 = vpop.permute.xlu0 %365
        %s369 = scalar_lea.vmem %s231, 80
        %370 = vst.msk [vmem:[%s369] sm:$0xff] %vm322, %v364
        %371 = vst.msk [vmem:[%s369 + $0x8] sm:$0xff] %vm322, %v366
        %372 = vrot.lane.b32.xlu0 %v314, 80
        %v373 = vpop.permute.xlu0 %372
        %374 = vrot.lane.b32.xlu0 %v319, 80
        %v375 = vpop.permute.xlu0 %374
        %s378 = scalar_lea.vmem %s231, 96
        %379 = vst.msk [vmem:[%s378] sm:$0xff] %vm322, %v373
        %380 = vst.msk [vmem:[%s378 + $0x8] sm:$0xff] %vm322, %v375
        %381 = vrot.lane.b32.xlu0 %v314, 72
        %v382 = vpop.permute.xlu0 %381
        %383 = vrot.lane.b32.xlu0 %v319, 72
        %v384 = vpop.permute.xlu0 %383
        %s387 = scalar_lea.vmem %s231, 112
        %388 = vst.msk [vmem:[%s387] sm:$0xff] %vm322, %v382
        %389 = vst.msk [vmem:[%s387 + $0x8] sm:$0xff] %vm322, %v384
        %390 = vrot.lane.b32.xlu0 %v314, 64
        %v391 = vpop.permute.xlu0 %390
        %392 = vrot.lane.b32.xlu0 %v319, 64
        %v393 = vpop.permute.xlu0 %392
        %s396 = scalar_lea.vmem %s231, 128
        %397 = vst.msk [vmem:[%s396] sm:$0xff] %vm322, %v391
        %398 = vst.msk [vmem:[%s396 + $0x8] sm:$0xff] %vm322, %v393
        %399 = vrot.lane.b32.xlu0 %v314, 56
        %v400 = vpop.permute.xlu0 %399
        %401 = vrot.lane.b32.xlu0 %v319, 56
        %v402 = vpop.permute.xlu0 %401
        %s405 = scalar_lea.vmem %s231, 144
        %406 = vst.msk [vmem:[%s405] sm:$0xff] %vm322, %v400
        %407 = vst.msk [vmem:[%s405 + $0x8] sm:$0xff] %vm322, %v402
        %408 = vrot.lane.b32.xlu0 %v314, 48
        %v409 = vpop.permute.xlu0 %408
        %410 = vrot.lane.b32.xlu0 %v319, 48
        %v411 = vpop.permute.xlu0 %410
        %s414 = scalar_lea.vmem %s231, 160
        %415 = vst.msk [vmem:[%s414] sm:$0xff] %vm322, %v409
        %416 = vst.msk [vmem:[%s414 + $0x8] sm:$0xff] %vm322, %v411
        %417 = vrot.lane.b32.xlu0 %v314, 40
        %v418 = vpop.permute.xlu0 %417
        %419 = vrot.lane.b32.xlu0 %v319, 40
        %v420 = vpop.permute.xlu0 %419
        %s423 = scalar_lea.vmem %s231, 176
        %424 = vst.msk [vmem:[%s423] sm:$0xff] %vm322, %v418
        %425 = vst.msk [vmem:[%s423 + $0x8] sm:$0xff] %vm322, %v420
        %s426 = smul.u32 12, %s23
        %s427 = smul.u32 2, %s24
        %p428 = scmp.lt.s32.totalorder %s22, 1
        %s429 = scalar_select %p428, %s22, 1
        %p430 = scmp.lt.s32.totalorder %s426, 11
        %s431 = scalar_select %p430, %s426, 11
        %p432 = scmp.lt.s32.totalorder %s427, 1
        %s433 = scalar_select %p432, %s427, 1
        %s434 = smul.addr %s431, 2
        %s435 = sadd.s32 %s433, %s434
        %s436 = smul.addr %s429, 24
        %s437 = sadd.s32 %s435, %s436
        %s438 = smul.addr %s437, 8
        %s439 = scalar_lea.vmem %s2, %s438
        // Predicated region
        $region37: #{tpu_custom_call.1} parent=27 // pred_check
          %p440 = pneg %p112
        $region38: #{tpu_custom_call.1} parent=27 // pred_check_branch
          %442 = sbr.rel (%p440) target = $region40
        $region39: #{tpu_custom_call.1} parent=27 // pred_region
          %s443 = smul.u32 12, %s23
          %s444 = smul.u32 2, %s24
        $region40: #{tpu_custom_call.1} parent=27 // pred_fallthru
          _
      $region28: #{tpu_custom_call.1} parent=5 // pred_fallthru
        _
      %p445 = scmp.le.s32.totalorder 2, %s12
      // Predicated region
      $region41: #{tpu_custom_call.1} parent=5 // pred_check
        %p446 = pneg %p445
      $region42: #{tpu_custom_call.1} parent=5 // pred_check_branch
        %448 = sbr.rel (%p446) target = $region44
      $region43: #{tpu_custom_call.1} parent=5 // pred_region
        %s449 = ssub.s32 %s12, 2
        // Predicated region
        $region45: #{tpu_custom_call.1} parent=43 // pred_check
          %p450 = pneg %p118
        $region46: #{tpu_custom_call.1} parent=43 // pred_check_branch
          %452 = sbr.rel (%p450) target = $region48
        $region47: #{tpu_custom_call.1} parent=43 // pred_region
          %s453 = smul.u32 12, %s26
          %s454 = smul.u32 2, %s27
          %p455 = scmp.lt.s32.totalorder %s25, 1
          %s456 = scalar_select %p455, %s25, 1
          %p457 = scmp.lt.s32.totalorder %s453, 11
          %s458 = scalar_select %p457, %s453, 11
          %p459 = scmp.lt.s32.totalorder %s454, 1
          %s460 = scalar_select %p459, %s454, 1
          %s461 = smul.addr %s458, 2
          %s462 = sadd.s32 %s460, %s461
          %s463 = smul.addr %s456, 24
          %s464 = sadd.s32 %s462, %s463
          %s465 = smul.addr %s464, 8
          %s466 = scalar_lea.vmem %s2, %s465
        $region48: #{tpu_custom_call.1} parent=43 // pred_fallthru
          _
      $region44: #{tpu_custom_call.1} parent=5 // pred_fallthru
        _
    $region6: #{tpu_custom_call.1} parent=1 // loop_footer
      %s16 = sadd.s32 1, %s12
    $region7: #{tpu_custom_call.1} parent=1 // loop_footer_branch
      %11 = sbr.rel target = $region3
    $region8: #{tpu_custom_call.1} parent=1 // loop_exit
      _
    %467 = vsyncpa [#allocation3], 1
    %s468 = scalar_lea.sflag [#allocation3], 1
    %469 = vsyncpa %s468, 1
    %470 = vsyncpa [#allocation5], 1

// kernel: tpu_custom_call.1
$region0: #{tpu_custom_call.1}
  #allocation0 [shape = 'u32[]', space=smem, size = 0x4, offset = 0x4, fixed_abs, tag = 'smem constant byte address 0x4 - core index']
  #allocation1 [shape = 'u32[144,128]{1,0:T(1,128)}', space=vmem, size = 0x12000, scoped, tag = 'internal scratch']
  %s0 = inlined_call_operand.hbm [shape: f32[2,16,32], index: 0, kind: input, shape index: {}]
  %s1 = inlined_call_operand.hbm [shape: f32[32,96], index: 1, kind: input, shape index: {}]
  %s2 = inlined_call_operand.vmem [shape: f32[2,12,16,8], index: 2, kind: output, shape index: {}]
  %s3 = sld [smem:[#allocation0]]
  $region49: #{tpu_custom_call.1} parent=0
    _
  %s5 = ssub.s32 1, %s3
  %s6 = scalar_select 0, %s5, %s3
  $region1: #{tpu_custom_call.1} parent=0
    #allocation2 [shape = 'u8[16384]{0}', space=vmem, size = 0x4000, scoped, tag = 'input window, operand 0']
    #allocation3 [shape = 's32[2]{0}', space=sflag, size = 0x8, scoped, tag = 'scoped memory for tpu_custom_call.1']
    #allocation4 [shape = 'u8[16384]{0}', space=vmem, size = 0x4000, scoped, tag = 'input window, operand 1, single buffered']
    #allocation5 [shape = 's32[1]{0}', space=sflag, size = 0x4, scoped, tag = 'scoped memory for tpu_custom_call.1']
    %7 = vsyncpa [#allocation3], 0
    %s8 = scalar_lea.sflag [#allocation3], 1
    %9 = vsyncpa %s8, 0
    %10 = vsyncpa [#allocation5], 0
    loop: start=0, step=1, limit=4
    $region2: #{tpu_custom_call.1} parent=1 // loop_pre_header
      _
    $region3: #{tpu_custom_call.1} parent=1 // loop_header
      %s12 = sphi 0, %s16
      %p13 = scmp.ge.s32.totalorder %s12, 4
      %s19 = sphi 0, %s38
      %s20 = sphi 0, %s34
      %s21 = sphi 0, %s30
      %s22 = sphi 0, %s19
      %s23 = sphi 0, %s20
      %s24 = sphi 0, %s21
      %s25 = sphi 0, %s22
      %s26 = sphi 0, %s23
      %s27 = sphi 0, %s24
      %s43 = sphi 0, %s45
      %s46 = sphi 0, %s43
      %s47 = sphi 0, %s46
      %s63 = sphi 0, %s47
      %s69 = sphi 0, %s71
      %s72 = sphi 0, %s69
      %s73 = sphi 0, %s72
      %s89 = sphi 0, %s73
      %s99 = sphi 0, %s101
      %s102 = sphi 0, %s99
      %s103 = sphi 0, %s102
      %s119 = sphi 0, %s103
    $region4: #{tpu_custom_call.1} parent=1 // loop_header_branch
      %15 = sbr.rel (%p13) target = $region8
    $region5: #{tpu_custom_call.1} parent=1 // loop_body
      %s17 = ssub.s32 %s12, 1
      %s18 = ssub.s32 %s12, 2
      %s28 = sadd.s32 1, %s21
      %p29 = scmp.ge.s32.totalorder %s28, 1
      %s30 = scalar_select %p29, 0, %s28
      %s31 = sadd.s32 1, %s20
      %s32 = scalar_select %p29, %s31, %s20
      %p33 = scmp.ge.s32.totalorder %s32, 1
      %s34 = scalar_select %p33, 0, %s32
      %s35 = sadd.s32 1, %s19
      %s36 = scalar_select %p33, %s35, %s19
      %p37 = scmp.ge.s32.totalorder %s36, 2
      %s38 = scalar_select %p37, 0, %s36
      %s39 = ssub.s32 %s19, %s38
      %s40 = ssub.s32 %s21, %s30
      %s41 = sor.u32 %s39, %s40
      %p42 = scmp.eq.s32.totalorder %s41, 0
      %s44 = sadd.s32 %s43, 1
      %s45 = scalar_select %p42, %s43, %s44
      %p48 = pneg %p42
      %p49 = scmp.eq.s32.totalorder %s12, 1
      %p50 = por %p48, %p49
      %p51 = scmp.ne.s32.totalorder %s43, %s46
      %p52 = scmp.eq.s32.totalorder %s12, 0
      %p53 = por %p51, %p52
      %p54 = scmp.ne.s32.totalorder %s43, %s46
      %p55 = scmp.eq.s32.totalorder %s17, 1
      %p56 = por %p54, %p55
      %p57 = scmp.ne.s32.totalorder %s46, %s47
      %p58 = scmp.eq.s32.totalorder %s17, 0
      %p59 = por %p57, %p58
      %p60 = scmp.ne.s32.totalorder %s46, %s47
      %p61 = scmp.eq.s32.totalorder %s18, 1
      %p62 = por %p60, %p61
      %p64 = scmp.ne.s32.totalorder %s47, %s63
      %p65 = scmp.eq.s32.totalorder %s18, 0
      %p66 = por %p64, %p65
      %s67 = ssub.s32 %s20, %s34
      %p68 = scmp.eq.s32.totalorder %s67, 0
      %s70 = sadd.s32 %s69, 1
      %s71 = scalar_select %p68, %s69, %s70
      %p74 = pneg %p68
      %p75 = scmp.eq.s32.totalorder %s12, 1
      %p76 = por %p74, %p75
      %p77 = scmp.ne.s32.totalorder %s69, %s72
      %p78 = scmp.eq.s32.totalorder %s12, 0
      %p79 = por %p77, %p78
      %p80 = scmp.ne.s32.totalorder %s69, %s72
      %p81 = scmp.eq.s32.totalorder %s17, 1
      %p82 = por %p80, %p81
      %p83 = scmp.ne.s32.totalorder %s72, %s73
      %p84 = scmp.eq.s32.totalorder %s17, 0
      %p85 = por %p83, %p84
      %p86 = scmp.ne.s32.totalorder %s72, %s73
      %p87 = scmp.eq.s32.totalorder %s18, 1
      %p88 = por %p86, %p87
      %p90 = scmp.ne.s32.totalorder %s73, %s89
      %p91 = scmp.eq.s32.totalorder %s18, 0
      %p92 = por %p90, %p91
      %s93 = ssub.s32 %s19, %s38
      %s94 = ssub.s32 %s20, %s34
      %s95 = sor.u32 %s93, %s94
      %s96 = ssub.s32 %s21, %s30
      %s97 = sor.u32 %s95, %s96
      %p98 = scmp.eq.s32.totalorder %s97, 0
      %s100 = sadd.s32 %s99, 1
      %s101 = scalar_select %p98, %s99, %s100
      %p104 = pneg %p98
      %p105 = scmp.eq.s32.totalorder %s12, 1
      %p106 = por %p104, %p105
      %p107 = scmp.ne.s32.totalorder %s99, %s102
      %p108 = scmp.eq.s32.totalorder %s12, 0
      %p109 = por %p107, %p108
      %p110 = scmp.ne.s32.totalorder %s99, %s102
      %p111 = scmp.eq.s32.totalorder %s17, 1
      %p112 = por %p110, %p111
      %p113 = scmp.ne.s32.totalorder %s102, %s103
      %p114 = scmp.eq.s32.totalorder %s17, 0
      %p115 = por %p113, %p114
      %p116 = scmp.ne.s32.totalorder %s102, %s103
      %p117 = scmp.eq.s32.totalorder %s18, 1
      %p118 = por %p116, %p117
      %p120 = scmp.ne.s32.totalorder %s103, %s119
      %p121 = scmp.eq.s32.totalorder %s18, 0
      %p122 = por %p120, %p121
      %p123 = scmp.le.s32.totalorder 1, %s12
      %p124 = scmp.lt.s32.totalorder %s12, 3
      %p125 = pnand %p123, %p124
      %p126 = pneg %p125
      // Predicated region
      $region9: #{tpu_custom_call.1} parent=5 // pred_check
        _
      $region10: #{tpu_custom_call.1} parent=5 // pred_check_branch
        %128 = sbr.rel (%p125) target = $region12
      $region11: #{tpu_custom_call.1} parent=5 // pred_region
        %s129 = ssub.s32 %s12, 1
        // Predicated region
        $region13: #{tpu_custom_call.1} parent=11 // pred_check
          %p130 = pneg %p85
        $region14: #{tpu_custom_call.1} parent=11 // pred_check_branch
          %132 = sbr.rel (%p130) target = $region16
        $region15: #{tpu_custom_call.1} parent=11 // pred_region
          %s134 = ssub.s32 512, 512
          %135 = vsyncadd [#allocation5], %s134
          %s136 = smul.addr %s23, 128
          %s137 = scalar_lea.hbm %s1, %s136
          %s138 = sshll.u32 [#allocation4], 4
          %s139 = int_to_ptr.vmem [resolvable:$true] %s138
          %144 = dma.hbm_to_vmem [thread:$0]  %s137, 512, %s139, [#allocation5], 128, 128, 8
        $region16: #{tpu_custom_call.1} parent=11 // pred_fallthru
          _
      $region12: #{tpu_custom_call.1} parent=5 // pred_fallthru
        _
      %p145 = scmp.lt.s32.totalorder %s12, 2
      // Predicated region
      $region17: #{tpu_custom_call.1} parent=5 // pred_check
        %p146 = pneg %p145
      $region18: #{tpu_custom_call.1} parent=5 // pred_check_branch
        %148 = sbr.rel (%p146) target = $region20
      $region19: #{tpu_custom_call.1} parent=5 // pred_region
        // Predicated region
        $region21: #{tpu_custom_call.1} parent=19 // pred_check
          %p149 = pneg %p53
        $region22: #{tpu_custom_call.1} parent=19 // pred_check_branch
          %151 = sbr.rel (%p149) target = $region24
        $region23: #{tpu_custom_call.1} parent=19 // pred_region
          %s152 = sand.u32 %s43, 1
          %s153 = scalar_lea.sflag [#allocation3], %s152
          %s154 = sand.u32 %s43, 1
          %s155 = smul.addr %s154, 16
          %s156 = scalar_lea.vmem [#allocation2], %s155
          %s157 = smul.u32 2, %s21
          %s159 = ssub.s32 256, 256
          %160 = vsyncadd %s153, %s159
          %s161 = smul.addr %s19, 2
          %s162 = sadd.s32 %s157, %s161
          %s163 = smul.addr %s162, 128
          %s164 = scalar_lea.hbm %s0, %s163
          %s165 = sshll.u32 %s156, 4
          %s166 = int_to_ptr.vmem [resolvable:$true] %s165
          %171 = dma.hbm_to_vmem [thread:$0]  %s164, 256, %s166, %s153, 128, 128, 8
        $region24: #{tpu_custom_call.1} parent=19 // pred_fallthru
          _
      $region20: #{tpu_custom_call.1} parent=5 // pred_fallthru
        _
      %p172 = scmp.le.s32.totalorder 1, %s12
      %p173 = scmp.lt.s32.totalorder %s12, 3
      %p174 = pnand %p172, %p173
      %p175 = pneg %p174
      // Predicated region
      $region25: #{tpu_custom_call.1} parent=5 // pred_check
        _
      $region26: #{tpu_custom_call.1} parent=5 // pred_check_branch
        %177 = sbr.rel (%p174) target = $region28
      $region27: #{tpu_custom_call.1} parent=5 // pred_region
        %s178 = ssub.s32 %s12, 1
        %s179 = sand.u32 %s46, 1
        %s180 = scalar_lea.sflag [#allocation3], %s179
        %s181 = sand.u32 %s46, 1
        %s182 = smul.addr %s181, 16
        %s183 = scalar_lea.vmem [#allocation2], %s182
        // Predicated region
        $region29: #{tpu_custom_call.1} parent=27 // pred_check
          %p184 = pneg %p59
        $region30: #{tpu_custom_call.1} parent=27 // pred_check_branch
          %186 = sbr.rel (%p184) target = $region32
        $region31: #{tpu_custom_call.1} parent=27 // pred_region
          %187 = dma.done %s180, 256
        $region32: #{tpu_custom_call.1} parent=27 // pred_fallthru
          _
        // Predicated region
        $region33: #{tpu_custom_call.1} parent=27 // pred_check
          %p188 = pneg %p85
        $region34: #{tpu_custom_call.1} parent=27 // pred_check_branch
          %190 = sbr.rel (%p188) target = $region36
        $region35: #{tpu_custom_call.1} parent=27 // pred_region
          %191 = dma.done [#allocation5], 512
        $region36: #{tpu_custom_call.1} parent=27 // pred_fallthru
          _
        %s192 = sand.u32 %s46, 1
        %s193 = scalar_lea.sflag [#allocation3], %s192
        %s194 = sand.u32 %s46, 1
        %s195 = smul.addr %s194, 16
        %s196 = scalar_lea.vmem [#allocation2], %s195
        %p197 = pneg %p59
        %p198 = pneg %p56
        %p199 = pneg %p85
        %p200 = pneg %p82
        %p201 = pneg %p115
        %p202 = pneg %p112
        %s203 = smul.u32 12, %s23
        %s204 = smul.u32 2, %s24
        %p205 = scmp.lt.s32.totalorder %s22, 1
        %s206 = scalar_select %p205, %s22, 1
        %p207 = scmp.lt.s32.totalorder %s203, 11
        %s208 = scalar_select %p207, %s203, 11
        %p209 = scmp.lt.s32.totalorder %s204, 1
        %s210 = scalar_select %p209, %s204, 1
        %s211 = smul.addr %s208, 2
        %s212 = sadd.s32 %s210, %s211
        %s213 = smul.addr %s206, 24
        %s214 = sadd.s32 %s212, %s213
        %s215 = smul.addr %s214, 8
        %s216 = scalar_lea.vmem %s2, %s215
        %s217 = smul.u32 2, %s24
        %s218 = smul.u32 12, %s23
        %s219 = smul.u32 2, %s24
        %p220 = scmp.lt.s32.totalorder %s22, 1
        %s221 = scalar_select %p220, %s22, 1
        %p222 = scmp.lt.s32.totalorder %s218, 11
        %s223 = scalar_select %p222, %s218, 11
        %p224 = scmp.lt.s32.totalorder %s219, 1
        %s225 = scalar_select %p224, %s219, 1
        %s226 = smul.addr %s223, 2
        %s227 = sadd.s32 %s225, %s226
        %s228 = smul.addr %s221, 24
        %s229 = sadd.s32 %s227, %s228
        %s230 = smul.addr %s229, 8
        %s231 = scalar_lea.vmem %s2, %s230
        %s232 = smul.u32 12, %s23
        %s233 = smul.u32 2, %s24
        %v234 = vld [vmem:[%s183] sm:$0xff]
        %v235 = vld [vmem:[%s183 + $0x8] sm:$0xff]
        %v236 = vld [vmem:[#allocation4] sm:$0xff]
        %v237 = vld [vmem:[#allocation4 + $0x8] sm:$0xff]
        %v238 = vld [vmem:[#allocation4 + $0x10] sm:$0xff]
        %v239 = vld [vmem:[#allocation4 + $0x18] sm:$0xff]
        %vm240 = vcmask 261120
        %v242 = vsel %vm240, %v234, 0
        %v245 = vsel %vm240, %v235, 0
        %247 = vmatprep.subr.mxu0 0.0
        %248 = vmatpush1.msra.mxu0 %v236
        %249 = vmatprep.subr.mxu0 0.0
        %250 = vmatpush1.msra.mxu0 %v237
        %251 = vmatprep.subr.mxu0 0.0
        %252 = vmatpush1.msra.mxu0 %v238
        %253 = vmatprep.subr.mxu0 0.0
        %254 = vmatpush1.msra.mxu0 %v239
        %255 = vmatprep.subr.mxu0 0.0
        %256 = vmatpush1.msra.mxu0 0.0
        %257 = vmatprep.subr.mxu0 0.0
        %258 = vmatpush1.msra.mxu0 0.0
        %259 = vmatprep.subr.mxu0 0.0
        %260 = vmatpush1.msra.mxu0 0.0
        %261 = vmatprep.subr.mxu0 0.0
        %262 = vmatpush1.msra.mxu0 0.0
        %263 = vmatprep.subr.mxu0 0.0
        %264 = vmatpush1.msra.mxu0 0.0
        %265 = vmatprep.subr.mxu0 0.0
        %266 = vmatpush1.msra.mxu0 0.0
        %267 = vmatprep.subr.mxu0 0.0
        %268 = vmatpush1.msra.mxu0 0.0
        %269 = vmatprep.subr.mxu0 0.0
        %270 = vmatpush1.msra.mxu0 0.0
        %271 = vmatprep.subr.mxu0 0.0
        %272 = vmatpush1.msra.mxu0 0.0
        %273 = vmatprep.subr.mxu0 0.0
        %274 = vmatpush1.msra.mxu0 0.0
        %275 = vmatprep.subr.mxu0 0.0
        %276 = vmatpush1.msra.mxu0 0.0
        %277 = vmatprep.subr.mxu0 0.0
        %278 = vmatpush1.msra.mxu0 0.0
        %279 = vmatprep.subr.mxu0 0.0
        %280 = vmatpush1.msra.mxu0 0.0
        %281 = vmatprep.subr.mxu0 0.0
        %282 = vmatpush1.msra.mxu0 0.0
        %283 = vmatprep.subr.mxu0 0.0
        %284 = vmatpush1.msra.mxu0 0.0
        %285 = vmatprep.subr.mxu0 0.0
        %286 = vmatpush1.msra.mxu0 0.0
        %287 = vmatprep.subr.mxu0 0.0
        %288 = vmatpush1.msra.mxu0 0.0
        %289 = vmatprep.subr.mxu0 0.0
        %290 = vmatpush1.msra.mxu0 0.0
        %291 = vmatprep.subr.mxu0 0.0
        %292 = vmatpush1.msra.mxu0 0.0
        %293 = vmatprep.subr.mxu0 0.0
        %294 = vmatpush1.msra.mxu0 0.0
        %295 = vmatprep.subr.mxu0 0.0
        %296 = vmatpush1.msra.mxu0 0.0
        %297 = vmatprep.subr.mxu0 0.0
        %298 = vmatpush1.msra.mxu0 0.0
        %299 = vmatprep.subr.mxu0 0.0
        %300 = vmatpush1.msra.mxu0 0.0
        %301 = vmatprep.subr.mxu0 0.0
        %302 = vmatpush1.msra.mxu0 0.0
        %303 = vmatprep.subr.mxu0 0.0
        %304 = vmatpush1.msra.mxu0 0.0
        %305 = vmatprep.subr.mxu0 0.0
        %306 = vmatpush1.msra.mxu0 0.0
        %307 = vmatprep.subr.mxu0 0.0
        %308 = vmatpush1.msra.mxu0 0.0
        %309 = vmatprep.subr.mxu0 0.0
        %310 = vmatpush1.msra.mxu0 0.0
        %311 = vmatprep.mubr.f32.mxu0 0.0
        %312 = vmatmul.mubr.f32.gmra.mrb[0].mxu0 %v242
        %v313 = vpop.f32.mrb[0].mxu0
        %v314 = vadd.f32 0.0, %v313
        %v315 = vpop.f32.mrb[0].mxu0
        %316 = vmatprep.mubr.f32.mxu0 0.0
        %317 = vmatmul.mubr.f32.gmra.mrb[0].mxu0 %v245
        %v318 = vpop.f32.mrb[0].mxu0
        %v319 = vadd.f32 0.0, %v318
        %v320 = vpop.f32.mrb[0].mxu0
        %321 = vdwg.mxu0
        %vm322 = vcmask 64512
        %323 = vst.msk [vmem:[%s231] sm:$0xff] %vm322, %v314
        %324 = vst.msk [vmem:[%s231 + $0x8] sm:$0xff] %vm322, %v319
        %327 = vrot.lane.b32.xlu0 %v314, 120
        %v328 = vpop.permute.xlu0 %327
        %329 = vrot.lane.b32.xlu0 %v319, 120
        %v330 = vpop.permute.xlu0 %329
        %s333 = scalar_lea.vmem %s231, 16
        %334 = vst.msk [vmem:[%s333] sm:$0xff] %vm322, %v328
        %335 = vst.msk [vmem:[%s333 + $0x8] sm:$0xff] %vm322, %v330
        %336 = vrot.lane.b32.xlu0 %v314, 112
        %v337 = vpop.permute.xlu0 %336
        %338 = vrot.lane.b32.xlu0 %v319, 112
        %v339 = vpop.permute.xlu0 %338
        %s342 = scalar_lea.vmem %s231, 32
        %343 = vst.msk [vmem:[%s342] sm:$0xff] %vm322, %v337
        %344 = vst.msk [vmem:[%s342 + $0x8] sm:$0xff] %vm322, %v339
        %345 = vrot.lane.b32.xlu0 %v314, 104
        %v346 = vpop.permute.xlu0 %345
        %347 = vrot.lane.b32.xlu0 %v319, 104
        %v348 = vpop.permute.xlu0 %347
        %s351 = scalar_lea.vmem %s231, 48
        %352 = vst.msk [vmem:[%s351] sm:$0xff] %vm322, %v346
        %353 = vst.msk [vmem:[%s351 + $0x8] sm:$0xff] %vm322, %v348
        %354 = vrot.lane.b32.xlu0 %v314, 96
        %v355 = vpop.permute.xlu0 %354
        %356 = vrot.lane.b32.xlu0 %v319, 96
        %v357 = vpop.permute.xlu0 %356
        %s360 = scalar_lea.vmem %s231, 64
        %361 = vst.msk [vmem:[%s360] sm:$0xff] %vm322, %v355
        %362 = vst.msk [vmem:[%s360 + $0x8] sm:$0xff] %vm322, %v357
        %363 = vrot.lane.b32.xlu0 %v314, 88
        %v364 = vpop.permute.xlu0 %363
        %365 = vrot.lane.b32.xlu0 %v319, 88
        %v366 = vpop.permute.xlu0 %365
        %s369 = scalar_lea.vmem %s231, 80
        %370 = vst.msk [vmem:[%s369] sm:$0xff] %vm322, %v364
        %371 = vst.msk [vmem:[%s369 + $0x8] sm:$0xff] %vm322, %v366
        %372 = vrot.lane.b32.xlu0 %v314, 80
        %v373 = vpop.permute.xlu0 %372
        %374 = vrot.lane.b32.xlu0 %v319, 80
        %v375 = vpop.permute.xlu0 %374
        %s378 = scalar_lea.vmem %s231, 96
        %379 = vst.msk [vmem:[%s378] sm:$0xff] %vm322, %v373
        %380 = vst.msk [vmem:[%s378 + $0x8] sm:$0xff] %vm322, %v375
        %381 = vrot.lane.b32.xlu0 %v314, 72
        %v382 = vpop.permute.xlu0 %381
        %383 = vrot.lane.b32.xlu0 %v319, 72
        %v384 = vpop.permute.xlu0 %383
        %s387 = scalar_lea.vmem %s231, 112
        %388 = vst.msk [vmem:[%s387] sm:$0xff] %vm322, %v382
        %389 = vst.msk [vmem:[%s387 + $0x8] sm:$0xff] %vm322, %v384
        %390 = vrot.lane.b32.xlu0 %v314, 64
        %v391 = vpop.permute.xlu0 %390
        %392 = vrot.lane.b32.xlu0 %v319, 64
        %v393 = vpop.permute.xlu0 %392
        %s396 = scalar_lea.vmem %s231, 128
        %397 = vst.msk [vmem:[%s396] sm:$0xff] %vm322, %v391
        %398 = vst.msk [vmem:[%s396 + $0x8] sm:$0xff] %vm322, %v393
        %399 = vrot.lane.b32.xlu0 %v314, 56
        %v400 = vpop.permute.xlu0 %399
        %401 = vrot.lane.b32.xlu0 %v319, 56
        %v402 = vpop.permute.xlu0 %401
        %s405 = scalar_lea.vmem %s231, 144
        %406 = vst.msk [vmem:[%s405] sm:$0xff] %vm322, %v400
        %407 = vst.msk [vmem:[%s405 + $0x8] sm:$0xff] %vm322, %v402
        %408 = vrot.lane.b32.xlu0 %v314, 48
        %v409 = vpop.permute.xlu0 %408
        %410 = vrot.lane.b32.xlu0 %v319, 48
        %v411 = vpop.permute.xlu0 %410
        %s414 = scalar_lea.vmem %s231, 160
        %415 = vst.msk [vmem:[%s414] sm:$0xff] %vm322, %v409
        %416 = vst.msk [vmem:[%s414 + $0x8] sm:$0xff] %vm322, %v411
        %417 = vrot.lane.b32.xlu0 %v314, 40
        %v418 = vpop.permute.xlu0 %417
        %419 = vrot.lane.b32.xlu0 %v319, 40
        %v420 = vpop.permute.xlu0 %419
        %s423 = scalar_lea.vmem %s231, 176
        %424 = vst.msk [vmem:[%s423] sm:$0xff] %vm322, %v418
        %425 = vst.msk [vmem:[%s423 + $0x8] sm:$0xff] %vm322, %v420
        %s426 = smul.u32 12, %s23
        %s427 = smul.u32 2, %s24
        %p428 = scmp.lt.s32.totalorder %s22, 1
        %s429 = scalar_select %p428, %s22, 1
        %p430 = scmp.lt.s32.totalorder %s426, 11
        %s431 = scalar_select %p430, %s426, 11
        %p432 = scmp.lt.s32.totalorder %s427, 1
        %s433 = scalar_select %p432, %s427, 1
        %s434 = smul.addr %s431, 2
        %s435 = sadd.s32 %s433, %s434
        %s436 = smul.addr %s429, 24
        %s437 = sadd.s32 %s435, %s436
        %s438 = smul.addr %s437, 8
        %s439 = scalar_lea.vmem %s2, %s438
        // Predicated region
        $region37: #{tpu_custom_call.1} parent=27 // pred_check
          %p440 = pneg %p112
        $region38: #{tpu_custom_call.1} parent=27 // pred_check_branch
          %442 = sbr.rel (%p440) target = $region40
        $region39: #{tpu_custom_call.1} parent=27 // pred_region
          %s443 = smul.u32 12, %s23
          %s444 = smul.u32 2, %s24
        $region40: #{tpu_custom_call.1} parent=27 // pred_fallthru
          _
      $region28: #{tpu_custom_call.1} parent=5 // pred_fallthru
        _
      %p445 = scmp.le.s32.totalorder 2, %s12
      // Predicated region
      $region41: #{tpu_custom_call.1} parent=5 // pred_check
        %p446 = pneg %p445
      $region42: #{tpu_custom_call.1} parent=5 // pred_check_branch
        %448 = sbr.rel (%p446) target = $region44
      $region43: #{tpu_custom_call.1} parent=5 // pred_region
        %s449 = ssub.s32 %s12, 2
        // Predicated region
        $region45: #{tpu_custom_call.1} parent=43 // pred_check
          %p450 = pneg %p118
        $region46: #{tpu_custom_call.1} parent=43 // pred_check_branch
          %452 = sbr.rel (%p450) target = $region48
        $region47: #{tpu_custom_call.1} parent=43 // pred_region
          %s453 = smul.u32 12, %s26
          %s454 = smul.u32 2, %s27
          %p455 = scmp.lt.s32.totalorder %s25, 1
          %s456 = scalar_select %p455, %s25, 1
          %p457 = scmp.lt.s32.totalorder %s453, 11
          %s458 = scalar_select %p457, %s453, 11
          %p459 = scmp.lt.s32.totalorder %s454, 1
          %s460 = scalar_select %p459, %s454, 1
          %s461 = smul.addr %s458, 2
          %s462 = sadd.s32 %s460, %s461
          %s463 = smul.addr %s456, 24
          %s464 = sadd.s32 %s462, %s463
          %s465 = smul.addr %s464, 8
          %s466 = scalar_lea.vmem %s2, %s465
        $region48: #{tpu_custom_call.1} parent=43 // pred_fallthru
          _
      $region44: #{tpu_custom_call.1} parent=5 // pred_fallthru
        _
    $region6: #{tpu_custom_call.1} parent=1 // loop_footer
      %s16 = sadd.s32 1, %s12
    $region7: #{tpu_custom_call.1} parent=1 // loop_footer_branch
      %11 = sbr.rel target = $region3
    $region8: #{tpu_custom_call.1} parent=1 // loop_exit
      _
    %467 = vsyncpa [#allocation3], 1
    %s468 = scalar_lea.sflag [#allocation3], 1
    %469 = vsyncpa %s468, 1
    %470 = vsyncpa [#allocation5], 1

</llo_original>
